<compile_context>
chip_gen: v5e
topology: v5e:2x2
jax: 0.10.0
libtpu: 0.0.40
codegen_flags: <defaults>
</compile_context>

<pallas_src>
import jax
import jax.numpy as jnp
from jax.experimental import pallas as pl
from jax.experimental.pallas import tpu as pltpu


def _round_up(x, m):
    return ((x + m - 1) // m) * m


def _choose_tile(B, tile_b):
    """Pick the lane tile (multiple of 128) and the padded batch extent.

    - rounds the requested tile up to a multiple of 128 (Mosaic lane rule,
      unmasked full-line stores),
    - clamps it to the (128-rounded) batch,
    - caps it so the batch grid has >= 2 steps when the batch allows it
      (v7x megacore: the "parallel" axis needs >= 2 iterations to engage the
      second TensorCore; harmless on single-TC v5e / v6e).
    """
    b128 = _round_up(max(int(B), 1), 128)
    tile_b = _round_up(max(int(tile_b), 128), 128)
    tile_b = min(tile_b, b128)
    if b128 >= 256 and tile_b > b128 // 2:
        tile_b = max(128, (b128 // 2) // 128 * 128)
    b_pad = _round_up(b128, tile_b)
    return tile_b, b_pad


def _mlp_t(xt, w1, b1, w2, b2, w3, b3):
    """Transposed 3-layer MLP: (state_dim, T) -> (action_num, T), f32 result."""
    # TODO(synk): if a bundle dump shows the MXU-push slot still binding after
    # the bf16 switch, move fc1 (K=4) onto the VPU via broadcast FMAs.
    h1 = jnp.dot(w1, xt, preferred_element_type=jnp.float32) + b1
    h1 = jnp.maximum(h1, 0.0).astype(w2.dtype)
    h2 = jnp.dot(w2, h1, preferred_element_type=jnp.float32) + b2
    h2 = jnp.maximum(h2, 0.0).astype(w3.dtype)
    return jnp.dot(w3, h2, preferred_element_type=jnp.float32) + b3


def _qnet_q_kernel(xt_ref, w1_ref, b1_ref, w2_ref, b2_ref, w3_ref, b3_ref, qt_ref):
    q = _mlp_t(xt_ref[...], w1_ref[...], b1_ref[...], w2_ref[...], b2_ref[...],
               w3_ref[...], b3_ref[...])
    qt_ref[...] = q.astype(qt_ref.dtype)


def _qnet_act_kernel(xt_ref, w1_ref, b1_ref, w2_ref, b2_ref, w3_ref, b3_ref, act_ref):
    q = _mlp_t(xt_ref[...], w1_ref[...], b1_ref[...], w2_ref[...], b2_ref[...],
               w3_ref[...], b3_ref[...])
    # Fused greedy argmax over the action (sublane) axis; first-max tie-break
    # matches jnp.argmax. Handful of VPU/XLU ops per 128 lanes -> free while
    # the MXU push slot is the bottleneck.
    idx = jax.lax.broadcasted_iota(jnp.int32, q.shape, 0)
    qmax = jnp.max(q, axis=0, keepdims=True)
    act = jnp.min(jnp.where(q >= qmax, idx, q.shape[0]), axis=0, keepdims=True)
    act_ref[...] = act.astype(jnp.int32)


def _qnet_core(xt, params, kernel, out_rows, out_dtype, tile_b, compute_dtype):
    """Feature-major core: xt (state_dim, B) -> (out_rows, B)."""
    state_dim, B = xt.shape
    tile_b, b_pad = _choose_tile(B, tile_b)

    xt = xt.astype(compute_dtype)
    if b_pad != B:
        # Padded lanes compute ReLU(bias) garbage; they are sliced off below
        # before any consumer (including the fused-argmax path) sees them.
        xt = jnp.pad(xt, ((0, 0), (0, b_pad - B)))

    w1, w2, w3 = (params[k].astype(compute_dtype) for k in ("w1", "w2", "w3"))
    b1, b2, b3 = (params[k].astype(jnp.float32) for k in ("b1", "b2", "b3"))

    const = lambda i: (0, 0)  # weights/biases: same block every step -> no re-DMA
    out_t = pl.pallas_call(
        kernel,
        out_shape=jax.ShapeDtypeStruct((out_rows, b_pad), out_dtype),
        grid_spec=pltpu.PrefetchScalarGridSpec(
            num_scalar_prefetch=0,
            grid=(b_pad // tile_b,),
            in_specs=[
                pl.BlockSpec((state_dim, tile_b), lambda i: (0, i)),
                pl.BlockSpec(w1.shape, const),
                pl.BlockSpec(b1.shape, const),
                pl.BlockSpec(w2.shape, const),
                pl.BlockSpec(b2.shape, const),
                pl.BlockSpec(w3.shape, const),
                pl.BlockSpec(b3.shape, const),
            ],
            out_specs=pl.BlockSpec((out_rows, tile_b), lambda i: (0, i)),
        ),
        compiler_params=pltpu.CompilerParams(
            dimension_semantics=("parallel",),  # megacore sharding on v7x
        ),
    )(xt, w1, b1, w2, b2, w3, b3)

    return out_t[:, :B] if b_pad != B else out_t


def qnet_forward_t(xt, params, *, tile_b=16384, compute_dtype=jnp.bfloat16,
                   out_dtype=jnp.float32):
    """Preferred feature-major API: xt (state_dim, B) -> Q^T (action_num, B).

    No wrapper-side transpose passes over HBM. Pass out_dtype=jnp.bfloat16 to
    also halve the Q-value writeback bytes.
    """
    action_num = params["w3"].shape[0]
    return _qnet_core(xt, params, _qnet_q_kernel, action_num, out_dtype,
                      tile_b, compute_dtype)


def qnet_greedy_actions_t(xt, params, *, tile_b=16384, compute_dtype=jnp.bfloat16):
    """Feature-major greedy-action API: xt (state_dim, B) -> actions (B,) int32.

    Fuses the argmax over actions in-kernel and drops the Q-value output
    entirely (no output transpose, minimal writeback bytes).
    """
    act = _qnet_core(xt, params, _qnet_act_kernel, 1, jnp.int32,
                     tile_b, compute_dtype)
    return act[0]


def qnet_forward(x, params, *, tile_b=16384, compute_dtype=jnp.bfloat16,
                 out_dtype=jnp.float32):
    """PyTorch-compatible API matching QNet.forward:
    x (B, state_dim) f32 -> (B, action_num).

    The transposes here are extra HBM passes; prefer qnet_forward_t /
    qnet_greedy_actions_t when the producer/consumer can use feature-major.
    """
    return qnet_forward_t(x.T, params, tile_b=tile_b,
                          compute_dtype=compute_dtype, out_dtype=out_dtype).T


def init_params(key, state_dim, action_num):
    """torch.nn.Linear-style init: weights (out_features, in_features),
    biases (out_features, 1), U(-1/sqrt(fan_in), 1/sqrt(fan_in))."""
    def linear(key, fan_in, fan_out):
        kw, kb = jax.random.split(key)
        bound = 1.0 / jnp.sqrt(fan_in)
        w = jax.random.uniform(kw, (fan_out, fan_in), jnp.float32, -bound, bound)
        b = jax.random.uniform(kb, (fan_out, 1), jnp.float32, -bound, bound)
        return w, b

    k1, k2, k3 = jax.random.split(key, 3)
    w1, b1 = linear(k1, state_dim, 16)
    w2, b2 = linear(k2, 16, 16)
    w3, b3 = linear(k3, 16, action_num)
    return {"w1": w1, "b1": b1, "w2": w2, "b2": b2, "w3": w3, "b3": b3}


def qnet_ref(x, p):
    """Pure-JAX reference (PyTorch layout: y = x @ W.T + b)."""
    h1 = jnp.maximum(x @ p["w1"].T + p["b1"].T, 0.0)
    h2 = jnp.maximum(h1 @ p["w2"].T + p["b2"].T, 0.0)
    return h2 @ p["w3"].T + p["b3"].T


if __name__ == "__main__":
    # CartPole-v0: state_dim=4, action_num=2
    state_dim, action_num, batch = 4, 2, 8

    key = jax.random.PRNGKey(0)
    kx, kp, kb = jax.random.split(key, 3)
    x = jax.random.normal(kx, (batch, state_dim), jnp.float32)
    params = init_params(kp, state_dim, action_num)
    ref = qnet_ref(x, params)

    # Small inference batch, f32 compute: tight tolerance.
    out32 = jax.block_until_ready(qnet_forward(x, params, compute_dtype=jnp.float32))
    assert out32.shape == (batch, action_num)
    assert jnp.allclose(out32, ref, atol=1e-4, rtol=1e-4)

    # Default bf16-operand path (f32 accumulate, f32 bias/ReLU): loose tolerance
    # (input states are also cast to bf16 — fine for a DQN head).
    out16 = jax.block_until_ready(qnet_forward(x, params))
    assert out16.shape == (batch, action_num)
    assert jnp.allclose(out16, ref, atol=1e-1, rtol=1e-1)

    # Batch that is not a tile multiple: exercises lane padding, the
    # multiple-of-128 tile rounding, and a multi-step (>=2) batch grid.
    xb = jax.random.normal(kb, (300, state_dim), jnp.float32)
    refb = qnet_ref(xb, params)
    outb = jax.block_until_ready(
        qnet_forward(xb, params, tile_b=1000, compute_dtype=jnp.float32))
    assert outb.shape == (300, action_num)
    assert jnp.allclose(outb, refb, atol=1e-4, rtol=1e-4)

    # Feature-major (transpose-free) API.
    qt = jax.block_until_ready(qnet_forward_t(xb.T, params, compute_dtype=jnp.float32))
    assert qt.shape == (action_num, 300)
    assert jnp.allclose(qt.T, refb, atol=1e-4, rtol=1e-4)

    # Fused greedy-action path (in-kernel argmax, no Q writeback).
    act = jax.block_until_ready(
        qnet_greedy_actions_t(xb.T, params, compute_dtype=jnp.float32))
    assert act.shape == (300,)
    assert act.dtype == jnp.int32
    assert jnp.array_equal(act, jnp.argmax(qt, axis=0).astype(jnp.int32))

    print("KERNEL_OK")
</pallas_src>

<mosaic_0001>
module attributes {stable_mosaic.version = 11 : i64} {
  func.func @_qnet_q_kernel(%arg0: i32, %arg1: memref<4x128xf32, #tpu.memory_space<vmem>>, %arg2: memref<16x4xf32, #tpu.memory_space<vmem>>, %arg3: memref<16x1xf32, #tpu.memory_space<vmem>>, %arg4: memref<16x16xf32, #tpu.memory_space<vmem>>, %arg5: memref<16x1xf32, #tpu.memory_space<vmem>>, %arg6: memref<2x16xf32, #tpu.memory_space<vmem>>, %arg7: memref<2x1xf32, #tpu.memory_space<vmem>>, %arg8: memref<2x128xf32, #tpu.memory_space<vmem>>) attributes {dimension_semantics = [#tpu.dimension_semantics<parallel>], iteration_bounds = array<i64: 1>, scalar_prefetch = 0 : i64, scratch_operands = 0 : i64, tpu.core_type = #tpu.core_type<tc>, window_params = [{transform_indices = @transform_0, window_bounds = array<i64: 4, 128>}, {pipeline_mode = #tpu.pipeline_mode<synchronous>, transform_indices = @transform_1, window_bounds = array<i64: 16, 4>}, {pipeline_mode = #tpu.pipeline_mode<synchronous>, transform_indices = @transform_2, window_bounds = array<i64: 16, 1>}, {pipeline_mode = #tpu.pipeline_mode<synchronous>, transform_indices = @transform_3, window_bounds = array<i64: 16, 16>}, {pipeline_mode = #tpu.pipeline_mode<synchronous>, transform_indices = @transform_4, window_bounds = array<i64: 16, 1>}, {pipeline_mode = #tpu.pipeline_mode<synchronous>, transform_indices = @transform_5, window_bounds = array<i64: 2, 16>}, {pipeline_mode = #tpu.pipeline_mode<synchronous>, transform_indices = @transform_6, window_bounds = array<i64: 2, 1>}, {transform_indices = @transform_7, window_bounds = array<i64: 2, 128>}]} {
    %c0 = arith.constant 0 : index
    %c0_0 = arith.constant 0 : index
    %0 = vector.load %arg1[%c0, %c0_0] : memref<4x128xf32, #tpu.memory_space<vmem>>, vector<4x128xf32>
    %c0_1 = arith.constant 0 : index
    %c0_2 = arith.constant 0 : index
    %1 = vector.load %arg2[%c0_1, %c0_2] : memref<16x4xf32, #tpu.memory_space<vmem>>, vector<16x4xf32>
    %c0_3 = arith.constant 0 : index
    %c0_4 = arith.constant 0 : index
    %2 = vector.load %arg3[%c0_3, %c0_4] : memref<16x1xf32, #tpu.memory_space<vmem>>, vector<16x1xf32>
    %c0_5 = arith.constant 0 : index
    %c0_6 = arith.constant 0 : index
    %3 = vector.load %arg4[%c0_5, %c0_6] : memref<16x16xf32, #tpu.memory_space<vmem>>, vector<16x16xf32>
    %c0_7 = arith.constant 0 : index
    %c0_8 = arith.constant 0 : index
    %4 = vector.load %arg5[%c0_7, %c0_8] : memref<16x1xf32, #tpu.memory_space<vmem>>, vector<16x1xf32>
    %c0_9 = arith.constant 0 : index
    %c0_10 = arith.constant 0 : index
    %5 = vector.load %arg6[%c0_9, %c0_10] : memref<2x16xf32, #tpu.memory_space<vmem>>, vector<2x16xf32>
    %c0_11 = arith.constant 0 : index
    %c0_12 = arith.constant 0 : index
    %6 = vector.load %arg7[%c0_11, %c0_12] : memref<2x1xf32, #tpu.memory_space<vmem>>, vector<2x1xf32>
    %cst = arith.constant dense<0.000000e+00> : vector<16x128xf32>
    %7 = tpu.matmul %1, %0, %cst {dimension_numbers = #tpu.dot_dimension_numbers<[1], [0], [0], [1], [0, 0, 1, 1], [], []>} : vector<16x4xf32>, vector<4x128xf32>, vector<16x128xf32> -> vector<16x128xf32>
    %8 = vector.broadcast %2 : vector<16x1xf32> to vector<16x128xf32>
    %9 = arith.addf %7, %8 : vector<16x128xf32>
    %cst_13 = arith.constant 0.000000e+00 : f32
    %10 = vector.broadcast %cst_13 : f32 to vector<16x128xf32>
    %11 = arith.maximumf %9, %10 : vector<16x128xf32>
    %cst_14 = arith.constant dense<0.000000e+00> : vector<16x128xf32>
    %12 = tpu.matmul %3, %11, %cst_14 {dimension_numbers = #tpu.dot_dimension_numbers<[1], [0], [0], [1], [0, 0, 1, 1], [], []>} : vector<16x16xf32>, vector<16x128xf32>, vector<16x128xf32> -> vector<16x128xf32>
    %13 = vector.broadcast %4 : vector<16x1xf32> to vector<16x128xf32>
    %14 = arith.addf %12, %13 : vector<16x128xf32>
    %cst_15 = arith.constant 0.000000e+00 : f32
    %15 = vector.broadcast %cst_15 : f32 to vector<16x128xf32>
    %16 = arith.maximumf %14, %15 : vector<16x128xf32>
    %cst_16 = arith.constant dense<0.000000e+00> : vector<2x128xf32>
    %17 = tpu.matmul %5, %16, %cst_16 {dimension_numbers = #tpu.dot_dimension_numbers<[1], [0], [0], [1], [0, 0, 1, 1], [], []>} : vector<2x16xf32>, vector<16x128xf32>, vector<2x128xf32> -> vector<2x128xf32>
    %18 = vector.broadcast %6 : vector<2x1xf32> to vector<2x128xf32>
    %19 = arith.addf %17, %18 : vector<2x128xf32>
    %c0_17 = arith.constant 0 : index
    %c0_18 = arith.constant 0 : index
    %20 = vector.load %arg8[%c0_17, %c0_18] : memref<2x128xf32, #tpu.memory_space<vmem>>, vector<2x128xf32>
    tpu.vector_store %arg8[%c0_17, %c0_18], %19 {strides = array<i32>} : memref<2x128xf32, #tpu.memory_space<vmem>>, vector<2x128xf32>,
    return
  }
  func.func @transform_0(%arg0: i32) -> (i32, i32) {
    %c0_i32 = arith.constant 0 : i32
    %c0_i32_0 = arith.constant 0 : i32
    return %c0_i32, %arg0 : i32, i32
  }
  func.func @transform_1(%arg0: i32) -> (i32, i32) {
    %c0_i32 = arith.constant 0 : i32
    %c0_i32_0 = arith.constant 0 : i32
    %c0_i32_1 = arith.constant 0 : i32
    return %c0_i32, %c0_i32_0 : i32, i32
  }
  func.func @transform_2(%arg0: i32) -> (i32, i32) {
    %c0_i32 = arith.constant 0 : i32
    %c0_i32_0 = arith.constant 0 : i32
    %c0_i32_1 = arith.constant 0 : i32
    return %c0_i32, %c0_i32_0 : i32, i32
  }
  func.func @transform_3(%arg0: i32) -> (i32, i32) {
    %c0_i32 = arith.constant 0 : i32
    %c0_i32_0 = arith.constant 0 : i32
    %c0_i32_1 = arith.constant 0 : i32
    return %c0_i32, %c0_i32_0 : i32, i32
  }
  func.func @transform_4(%arg0: i32) -> (i32, i32) {
    %c0_i32 = arith.constant 0 : i32
    %c0_i32_0 = arith.constant 0 : i32
    %c0_i32_1 = arith.constant 0 : i32
    return %c0_i32, %c0_i32_0 : i32, i32
  }
  func.func @transform_5(%arg0: i32) -> (i32, i32) {
    %c0_i32 = arith.constant 0 : i32
    %c0_i32_0 = arith.constant 0 : i32
    %c0_i32_1 = arith.constant 0 : i32
    return %c0_i32, %c0_i32_0 : i32, i32
  }
  func.func @transform_6(%arg0: i32) -> (i32, i32) {
    %c0_i32 = arith.constant 0 : i32
    %c0_i32_0 = arith.constant 0 : i32
    %c0_i32_1 = arith.constant 0 : i32
    return %c0_i32, %c0_i32_0 : i32, i32
  }
  func.func @transform_7(%arg0: i32) -> (i32, i32) {
    %c0_i32 = arith.constant 0 : i32
    %c0_i32_0 = arith.constant 0 : i32
    return %c0_i32, %arg0 : i32, i32
  }
}

</mosaic_0001>

<llo_original>
// kernel: tpu_custom_call.1
$region0: #{tpu_custom_call.1}
  #allocation0 [shape = 'u32[]', space=smem, size = 0x4, offset = 0x4, fixed_abs, tag = 'smem constant byte address 0x4 - core index']
  #allocation1 [shape = 'u32[72,128]{1,0:T(1,128)}', space=vmem, size = 0x9000, scoped, tag = 'internal scratch']
  %s0 = inlined_call_operand.vmem [shape: f32[4,128], index: 0, kind: input, shape index: {}]
  %s1 = inlined_call_operand.vmem [shape: f32[16,4], index: 1, kind: input, shape index: {}]
  %s2 = inlined_call_operand.vmem [shape: f32[16,1], index: 2, kind: input, shape index: {}]
  %s3 = inlined_call_operand.vmem [shape: f32[16,16], index: 3, kind: input, shape index: {}]
  %s4 = inlined_call_operand.vmem [shape: f32[16,1], index: 4, kind: input, shape index: {}]
  %s5 = inlined_call_operand.vmem [shape: f32[2,16], index: 5, kind: input, shape index: {}]
  %s6 = inlined_call_operand.vmem [shape: f32[2,1], index: 6, kind: input, shape index: {}]
  %s7 = inlined_call_operand.hbm [shape: f32[2,128], index: 7, kind: output, shape index: {}]
  %s8 = sld [smem:[#allocation0]]
  $region38: #{tpu_custom_call.1} parent=0
    _
  %s10 = ssub.s32 1, %s8
  %s11 = scalar_select 0, %s10, %s8
  $region1: #{tpu_custom_call.1} parent=0
    #allocation2 [shape = 'u8[1024]{0}', space=vmem, size = 0x400, scoped, tag = 'output window, operand 0, single buffered']
    #allocation3 [shape = 's32[1]{0}', space=sflag, size = 0x4, scoped, tag = 'scoped memory for tpu_custom_call.1']
    %12 = vsyncpa [#allocation3], 0
    // Predicated region
    $region2: #{tpu_custom_call.1} parent=1 // pred_check
      _
    $region3: #{tpu_custom_call.1} parent=1 // pred_check_branch
      %14 = sbr.rel (0) target = $region5
    $region4: #{tpu_custom_call.1} parent=1 // pred_region
      _
    $region5: #{tpu_custom_call.1} parent=1 // pred_fallthru
      _
    // Predicated region
    $region6: #{tpu_custom_call.1} parent=1 // pred_check
      _
    $region7: #{tpu_custom_call.1} parent=1 // pred_check_branch
      %16 = sbr.rel (0) target = $region9
    $region8: #{tpu_custom_call.1} parent=1 // pred_region
      _
    $region9: #{tpu_custom_call.1} parent=1 // pred_fallthru
      _
    // Predicated region
    $region10: #{tpu_custom_call.1} parent=1 // pred_check
      _
    $region11: #{tpu_custom_call.1} parent=1 // pred_check_branch
      %18 = sbr.rel (0) target = $region13
    $region12: #{tpu_custom_call.1} parent=1 // pred_region
      _
    $region13: #{tpu_custom_call.1} parent=1 // pred_fallthru
      _
    // Predicated region
    $region14: #{tpu_custom_call.1} parent=1 // pred_check
      _
    $region15: #{tpu_custom_call.1} parent=1 // pred_check_branch
      %20 = sbr.rel (0) target = $region17
    $region16: #{tpu_custom_call.1} parent=1 // pred_region
      _
    $region17: #{tpu_custom_call.1} parent=1 // pred_fallthru
      _
    // Predicated region
    $region18: #{tpu_custom_call.1} parent=1 // pred_check
      _
    $region19: #{tpu_custom_call.1} parent=1 // pred_check_branch
      %22 = sbr.rel (0) target = $region21
    $region20: #{tpu_custom_call.1} parent=1 // pred_region
      _
    $region21: #{tpu_custom_call.1} parent=1 // pred_fallthru
      _
    // Predicated region
    $region22: #{tpu_custom_call.1} parent=1 // pred_check
      _
    $region23: #{tpu_custom_call.1} parent=1 // pred_check_branch
      %24 = sbr.rel (0) target = $region25
    $region24: #{tpu_custom_call.1} parent=1 // pred_region
      _
    $region25: #{tpu_custom_call.1} parent=1 // pred_fallthru
      _
    // Predicated region
    $region26: #{tpu_custom_call.1} parent=1 // pred_check
      _
    $region27: #{tpu_custom_call.1} parent=1 // pred_check_branch
      %26 = sbr.rel (0) target = $region29
    $region28: #{tpu_custom_call.1} parent=1 // pred_region
      _
    $region29: #{tpu_custom_call.1} parent=1 // pred_fallthru
      _
    %v27 = vld [vmem:[%s0] sm:$0xf]
    %v28 = vld [vmem:[%s1] sm:$0xff]
    %v29 = vld [vmem:[%s1 + $0x8] sm:$0xff]
    %v30 = vld [vmem:[%s2] sm:$0xff]
    %v31 = vld [vmem:[%s2 + $0x8] sm:$0xff]
    %v32 = vld [vmem:[%s3] sm:$0xff]
    %v33 = vld [vmem:[%s3 + $0x8] sm:$0xff]
    %v34 = vld [vmem:[%s4] sm:$0xff]
    %v35 = vld [vmem:[%s4 + $0x8] sm:$0xff]
    %v36 = vld [vmem:[%s5] sm:$0x3]
    %v37 = vld [vmem:[%s6] sm:$0x3]
    %39 = vset.pattern.permute.xlu0 0
    %40 = vperm.xlu0 %39, %v30
    %v41 = vpop.permute.xlu0 %40
    %44 = vset.pattern.permute.xlu0 0
    %45 = vperm.xlu0 %44, %v31
    %v46 = vpop.permute.xlu0 %45
    %vm48 = vcmask 31744
    %v50 = vsel %vm48, %v28, 0
    %v53 = vsel %vm48, %v29, 0
    %vm55 = vcmask 1043456
    %v57 = vsel %vm55, %v27, 0
    %59 = vmatpush.msra.mxu0 0.0
    %60 = vmatpush.msra.mxu0 0.0
    %61 = vmatpush.msra.mxu0 0.0
    %62 = vmatpush.msra.mxu0 0.0
    %63 = vmatpush.msra.mxu0 0.0
    %64 = vmatpush.msra.mxu0 0.0
    %65 = vmatpush.msra.mxu0 0.0
    %66 = vmatpush.msra.mxu0 0.0
    %67 = vmatpush.msra.mxu0 0.0
    %68 = vmatpush.msra.mxu0 0.0
    %69 = vmatpush.msra.mxu0 0.0
    %70 = vmatpush.msra.mxu0 0.0
    %71 = vmatpush.msra.mxu0 0.0
    %72 = vmatpush.msra.mxu0 0.0
    %73 = vmatpush.msra.mxu0 0.0
    %74 = vmatpush.msra.mxu0 %v57
    %75 = vmatmul.f32.gmra.mxu0 %v50
    %v76 = vpop.f32.mrf.mxu0
    %v77 = vadd.f32 %v41, %v76
    %78 = vmatmul.f32.gmra.mxu0 %v53
    %v79 = vpop.f32.mrf.mxu0
    %v80 = vadd.f32 %v46, %v79
    %81 = vdwg.mxu0
    %v82 = vmax.f32 %v77, 0.0
    %v83 = vmax.f32 %v80, 0.0
    %85 = vset.pattern.permute.xlu0 0
    %86 = vperm.xlu0 %85, %v34
    %v87 = vpop.permute.xlu0 %86
    %90 = vset.pattern.permute.xlu0 0
    %91 = vperm.xlu0 %90, %v35
    %v92 = vpop.permute.xlu0 %91
    %vm94 = vcmask 130048
    %v96 = vsel %vm94, %v32, 0
    %v99 = vsel %vm94, %v33, 0
    %101 = vmatpush.msra.mxu0 0.0
    %102 = vmatpush.msra.mxu0 0.0
    %103 = vmatpush.msra.mxu0 0.0
    %104 = vmatpush.msra.mxu0 0.0
    %105 = vmatpush.msra.mxu0 0.0
    %106 = vmatpush.msra.mxu0 0.0
    %107 = vmatpush.msra.mxu0 0.0
    %108 = vmatpush.msra.mxu0 0.0
    %109 = vmatpush.msra.mxu0 0.0
    %110 = vmatpush.msra.mxu0 0.0
    %111 = vmatpush.msra.mxu0 0.0
    %112 = vmatpush.msra.mxu0 0.0
    %113 = vmatpush.msra.mxu0 0.0
    %114 = vmatpush.msra.mxu0 0.0
    %115 = vmatpush.msra.mxu0 %v83
    %116 = vmatpush.msra.mxu0 %v82
    %117 = vmatmul.f32.gmra.mxu0 %v96
    %v118 = vpop.f32.mrf.mxu0
    %v119 = vadd.f32 %v87, %v118
    %120 = vmatmul.f32.gmra.mxu0 %v99
    %v121 = vpop.f32.mrf.mxu0
    %v122 = vadd.f32 %v92, %v121
    %123 = vdwg.mxu0
    %v124 = vmax.f32 %v119, 0.0
    %v125 = vmax.f32 %v122, 0.0
    %127 = vset.pattern.permute.xlu0 0
    %128 = vperm.xlu0 %127, %v37
    %v129 = vpop.permute.xlu0 %128
    %v132 = vsel %vm94, %v36, 0
    %134 = vmatpush.msra.mxu0 0.0
    %135 = vmatpush.msra.mxu0 0.0
    %136 = vmatpush.msra.mxu0 0.0
    %137 = vmatpush.msra.mxu0 0.0
    %138 = vmatpush.msra.mxu0 0.0
    %139 = vmatpush.msra.mxu0 0.0
    %140 = vmatpush.msra.mxu0 0.0
    %141 = vmatpush.msra.mxu0 0.0
    %142 = vmatpush.msra.mxu0 0.0
    %143 = vmatpush.msra.mxu0 0.0
    %144 = vmatpush.msra.mxu0 0.0
    %145 = vmatpush.msra.mxu0 0.0
    %146 = vmatpush.msra.mxu0 0.0
    %147 = vmatpush.msra.mxu0 0.0
    %148 = vmatpush.msra.mxu0 %v125
    %149 = vmatpush.msra.mxu0 %v124
    %150 = vmatmul.f32.gmra.mxu0 %v132
    %v151 = vpop.f32.mrf.mxu0
    %v152 = vadd.f32 %v129, %v151
    %153 = vdwg.mxu0
    %154 = vst [vmem:[#allocation2] sm:$0x3] %v152
    // Predicated region
    $region30: #{tpu_custom_call.1} parent=1 // pred_check
      _
    $region31: #{tpu_custom_call.1} parent=1 // pred_check_branch
      %156 = sbr.rel (0) target = $region33
    $region32: #{tpu_custom_call.1} parent=1 // pred_region
      %158 = vsyncadd [#allocation3], 0
      %s160 = sshll.u32 [#allocation2], 4
      %s161 = int_to_ptr.vmem [resolvable:$true] %s160
      %s162 = sshll.u32 %s7, 4
      %s163 = int_to_ptr.hbm [resolvable:$true] %s162
      %165 = dma.vmem_to_hbm [thread:$0]  %s161, 32, %s163, [#allocation3]
    $region33: #{tpu_custom_call.1} parent=1 // pred_fallthru
      _
    // Predicated region
    $region34: #{tpu_custom_call.1} parent=1 // pred_check
      _
    $region35: #{tpu_custom_call.1} parent=1 // pred_check_branch
      %167 = sbr.rel (0) target = $region37
    $region36: #{tpu_custom_call.1} parent=1 // pred_region
      %169 = dma.done [#allocation3], 32
    $region37: #{tpu_custom_call.1} parent=1 // pred_fallthru
      _
    %170 = vsyncpa [#allocation3], 1

</llo_original>
